<compile_context>
chip_gen: v5e
topology: v5e:2x2
jax: 0.10.0
libtpu: 0.0.40
codegen_flags: <defaults>
</compile_context>

<pallas_src>
import functools
import math

import jax
import jax.numpy as jnp
from jax.experimental import pallas as pl
from jax.experimental.pallas import tpu as pltpu

EPS = 1e-5


# --------------------------------------------------------------------------- #
# Kernels
# --------------------------------------------------------------------------- #
def _fused_kernel(x_ref, gb_ref, o_ref, *, inv_n, eps):
    """One row-tile holds the full spatial extent: single-pass fused norm."""
    x = x_ref[...].astype(jnp.float32)                 # (tR, HW) f32
    gb = gb_ref[...]                                   # (tR, 2)  f32
    gamma = gb[:, 0:1]
    beta = gb[:, 1:2]

    mean = jnp.sum(x, axis=-1, keepdims=True) * inv_n  # (tR, 1)
    xc = x - mean                                      # two-pass variance (robust)
    var = jnp.sum(xc * xc, axis=-1, keepdims=True) * inv_n
    scale = gamma * jax.lax.rsqrt(var + eps)           # fold gamma into rstd
    o_ref[...] = (xc * scale + beta).astype(o_ref.dtype)


def _stats_kernel(x_ref, mean_ref, rstd_ref, sum_ref, sq_ref,
                  *, hw, inv_n, eps, tc, needs_mask):
    """Large-spatial path, pass 1: per-row mean / rstd with an HW grid axis."""
    c = pl.program_id(1)

    @pl.when(c == 0)
    def _():
        sum_ref[...] = jnp.zeros_like(sum_ref)
        sq_ref[...] = jnp.zeros_like(sq_ref)

    x = x_ref[...].astype(jnp.float32)                 # (tR, tC) f32
    if needs_mask:
        col = jax.lax.broadcasted_iota(jnp.int32, x.shape, 1) + c * tc
        x = jnp.where(col < hw, x, 0.0)                # zero the ragged lane tail
    sum_ref[...] += jnp.sum(x, axis=-1, keepdims=True)
    sq_ref[...] += jnp.sum(x * x, axis=-1, keepdims=True)

    @pl.when(c == pl.num_programs(1) - 1)
    def _():
        # TODO(synk): single-pass E[x^2]-mean^2 here; acceptable in f32 but less
        #             robust than the fused kernel's two-pass variance.
        mean = sum_ref[...] * inv_n
        var = jnp.maximum(sq_ref[...] * inv_n - mean * mean, 0.0)
        mean_ref[...] = mean
        rstd_ref[...] = jax.lax.rsqrt(var + eps)


def _apply_kernel(x_ref, gb_ref, mean_ref, rstd_ref, o_ref):
    """Large-spatial path, pass 2: out = x*scale + shift (per-row scale/shift)."""
    gb = gb_ref[...]                                   # (tR, 2) f32
    scale = gb[:, 0:1] * rstd_ref[...]                 # (tR, 1)
    shift = gb[:, 1:2] - mean_ref[...] * scale         # (tR, 1)
    o_ref[...] = (x_ref[...].astype(jnp.float32) * scale + shift).astype(o_ref.dtype)


# --------------------------------------------------------------------------- #
# Wrapper
# --------------------------------------------------------------------------- #
def _round_up(v, m):
    return (v + m - 1) // m * m


def _vmem_plan():
    """(vmem_limit_bytes, per-tile target bytes, min grid steps) per generation."""
    try:
        cap = int(pltpu.get_tpu_info().vmem_capacity_bytes)
    except Exception:
        cap = 64 << 20  # unknown -> conservative (v7x-safe)
    if cap >= (128 << 20):
        # v5e / v6e: big tiles amortize the ~0.35us per-step overhead.
        return 100 << 20, 56 << 20, 2
    # v7x-class (64 MiB per TC): leave headroom for Mosaic scratch, keep >= 8
    # grid steps so both TensorCores get work.
    return 48 << 20, 20 << 20, 8


def adaptive_norm(x, style, w, bias, *, eps=EPS, force_chunked=False, tc_override=None):
    """Adaptive instance norm.

    x:     (B, C, *D)   float32 or bfloat16
    style: (B, L)
    w:     (2C, L)      style -> (gamma, beta) projection weight
    bias:  (2C,)
    """
    B, C = x.shape[0], x.shape[1]
    spatial = x.shape[2:]
    HW = int(math.prod(spatial))
    rows = B * C

    # ---- style projection hoisted out of the kernel: one proper MXU matmul ----
    gb = (style.astype(jnp.float32) @ w.astype(jnp.float32).T
          + bias.reshape(1, 2 * C).astype(jnp.float32))            # (B, 2C)
    gamma = gb[:, :C].reshape(rows, 1)
    beta = gb[:, C:].reshape(rows, 1)
    gb_rows = jnp.concatenate([gamma, beta], axis=-1)              # (rows, 2) f32

    # (B, C) folded onto sublanes, flattened spatial onto lanes (free reshape).
    x2 = x.reshape(rows, HW)

    vmem_limit, vmem_target, min_steps = _vmem_plan()
    itemsize = jnp.dtype(x.dtype).itemsize
    # Per-row footprint of one fused tile: double-buffered in + out tiles plus
    # ~two live f32 temporaries inside the kernel (dtype-aware accounting).
    bytes_per_row = HW * (4 * itemsize + 8)

    fused_ok = (not force_chunked) and (8 * bytes_per_row <= vmem_target)

    if fused_ok:
        tR = max(8, (vmem_target // bytes_per_row) // 8 * 8)
        # Keep enough grid steps for dual-TC sharding / pipelining.
        tR = min(tR, max(8, (rows // min_steps) // 8 * 8))
        tR = min(tR, _round_up(rows, 8))
        grid = (pl.cdiv(rows, tR),)

        out = pl.pallas_call(
            functools.partial(_fused_kernel, inv_n=1.0 / HW, eps=eps),
            out_shape=jax.ShapeDtypeStruct((rows, HW), x.dtype),
            grid_spec=pltpu.PrefetchScalarGridSpec(
                num_scalar_prefetch=0,
                grid=grid,
                in_specs=[
                    pl.BlockSpec((tR, HW), lambda r: (r, 0)),   # x rows (full HW)
                    pl.BlockSpec((tR, 2), lambda r: (r, 0)),    # gamma|beta
                ],
                out_specs=pl.BlockSpec((tR, HW), lambda r: (r, 0)),
            ),
            compiler_params=pltpu.CompilerParams(
                dimension_semantics=("parallel",),
                vmem_limit_bytes=vmem_limit,
            ),
        )(x2, gb_rows)
        return out.reshape(B, C, *spatial)

    # ------------------ large-spatial fallback: stats + apply ------------------
    tR = 8
    if tc_override is not None:
        tC = int(tc_override)
    else:
        tC = max(128, (vmem_target // (tR * (4 * itemsize + 8))) // 128 * 128)
    tC = min(tC, _round_up(HW, 128))
    row_tiles = pl.cdiv(rows, tR)
    hw_tiles = pl.cdiv(HW, tC)
    needs_mask = (HW % tC) != 0

    mean, rstd = pl.pallas_call(
        functools.partial(_stats_kernel, hw=HW, inv_n=1.0 / HW, eps=eps,
                          tc=tC, needs_mask=needs_mask),
        out_shape=(jax.ShapeDtypeStruct((rows, 1), jnp.float32),
                   jax.ShapeDtypeStruct((rows, 1), jnp.float32)),
        grid_spec=pltpu.PrefetchScalarGridSpec(
            num_scalar_prefetch=0,
            grid=(row_tiles, hw_tiles),
            in_specs=[pl.BlockSpec((tR, tC), lambda r, c: (r, c))],
            out_specs=(pl.BlockSpec((tR, 1), lambda r, c: (r, 0)),
                       pl.BlockSpec((tR, 1), lambda r, c: (r, 0))),
            scratch_shapes=[pltpu.VMEM((tR, 1), jnp.float32),
                            pltpu.VMEM((tR, 1), jnp.float32)],
        ),
        compiler_params=pltpu.CompilerParams(
            dimension_semantics=("parallel", "arbitrary"),
            vmem_limit_bytes=vmem_limit,
        ),
    )(x2)

    out = pl.pallas_call(
        _apply_kernel,
        out_shape=jax.ShapeDtypeStruct((rows, HW), x.dtype),
        grid_spec=pltpu.PrefetchScalarGridSpec(
            num_scalar_prefetch=0,
            grid=(row_tiles, hw_tiles),
            in_specs=[
                pl.BlockSpec((tR, tC), lambda r, c: (r, c)),
                pl.BlockSpec((tR, 2), lambda r, c: (r, 0)),
                pl.BlockSpec((tR, 1), lambda r, c: (r, 0)),
                pl.BlockSpec((tR, 1), lambda r, c: (r, 0)),
            ],
            out_specs=pl.BlockSpec((tR, tC), lambda r, c: (r, c)),
        ),
        compiler_params=pltpu.CompilerParams(
            dimension_semantics=("parallel", "parallel"),
            vmem_limit_bytes=vmem_limit,
        ),
    )(x2, gb_rows, mean, rstd)
    return out.reshape(B, C, *spatial)


# --------------------------------------------------------------------------- #
# Pure-JAX reference
# --------------------------------------------------------------------------- #
def adaptive_norm_ref(x, style, w, bias, eps=EPS):
    B, C = x.shape[0], x.shape[1]
    red = tuple(range(2, x.ndim))
    gb = style.astype(jnp.float32) @ w.astype(jnp.float32).T \
        + bias.reshape(1, -1).astype(jnp.float32)
    bshape = (B, C) + (1,) * (x.ndim - 2)
    gamma = gb[:, :C].reshape(bshape)
    beta = gb[:, C:].reshape(bshape)
    xf = x.astype(jnp.float32)
    mean = xf.mean(axis=red, keepdims=True)
    var = ((xf - mean) ** 2).mean(axis=red, keepdims=True)
    return gamma * (xf - mean) / jnp.sqrt(var + eps) + beta


# --------------------------------------------------------------------------- #
# Demo / self-test
# --------------------------------------------------------------------------- #
if __name__ == "__main__":
    key = jax.random.PRNGKey(0)
    style_channels = 32  # L

    def run_case(B, C, spatial, dtype, atol, rtol, **kw):
        kx, ks, kw_ = jax.random.split(jax.random.fold_in(key, C * 1000 + B), 3)
        x = jax.random.normal(kx, (B, C) + spatial, dtype=jnp.float32)
        style = jax.random.normal(ks, (B, style_channels), dtype=jnp.float32)
        w = 0.1 * jax.random.normal(kw_, (2 * C, style_channels), dtype=jnp.float32)
        bias = jnp.concatenate(
            [jnp.ones((C,), jnp.float32), jnp.zeros((C,), jnp.float32)])
        x_in = x.astype(dtype)
        out = adaptive_norm(x_in, style, w, bias, **kw)
        jax.block_until_ready(out)
        assert out.shape == (B, C) + spatial
        assert out.dtype == dtype
        ref = adaptive_norm_ref(x_in.astype(jnp.float32), style, w, bias)
        assert jnp.allclose(out.astype(jnp.float32), ref, atol=atol, rtol=rtol), \
            f"mismatch for case B={B} C={C} spatial={spatial} dtype={dtype}"

    # 1) primary case: f32, fused single-pass path.
    run_case(2, 4, (16, 16), jnp.float32, 1e-4, 1e-4)
    # 2) bf16 I/O (f32 statistics in-kernel) -> halves HBM traffic.
    run_case(2, 4, (16, 16), jnp.bfloat16, 1e-1, 1e-1)
    # 3) ragged rows (10) and ragged / sub-128 lanes (7*9=63): fused path edge blocks.
    run_case(2, 5, (7, 9), jnp.float32, 1e-4, 1e-4)
    # 4) forced large-spatial fallback: HW grid axis with accumulators, ragged
    #    lane tail masking (288 % 128 != 0) and ragged row tail (10 rows).
    run_case(2, 5, (16, 18), jnp.float32, 5e-4, 5e-4,
             force_chunked=True, tc_override=128)

    print("KERNEL_OK")
</pallas_src>

<mosaic_0001>
module attributes {stable_mosaic.version = 11 : i64} {
  func.func @_fused_kernel(%arg0: i32, %arg1: memref<8x256xf32, #tpu.memory_space<vmem>>, %arg2: memref<8x2xf32, #tpu.memory_space<vmem>>, %arg3: memref<8x256xf32, #tpu.memory_space<vmem>>) attributes {dimension_semantics = [#tpu.dimension_semantics<parallel>], iteration_bounds = array<i64: 1>, scalar_prefetch = 0 : i64, scratch_operands = 0 : i64, tpu.core_type = #tpu.core_type<tc>, window_params = [{transform_indices = @transform_0, window_bounds = array<i64: 8, 256>}, {transform_indices = @transform_1, window_bounds = array<i64: 8, 2>}, {transform_indices = @transform_2, window_bounds = array<i64: 8, 256>}]} {
    %c0 = arith.constant 0 : index
    %c0_0 = arith.constant 0 : index
    %0 = vector.load %arg1[%c0, %c0_0] : memref<8x256xf32, #tpu.memory_space<vmem>>, vector<8x256xf32>
    %c0_1 = arith.constant 0 : index
    %c0_2 = arith.constant 0 : index
    %1 = vector.load %arg2[%c0_1, %c0_2] : memref<8x2xf32, #tpu.memory_space<vmem>>, vector<8x2xf32>
    %2 = vector.extract_strided_slice %1 {offsets = [0, 0], sizes = [8, 1], strides = [1, 1]} : vector<8x2xf32> to vector<8x1xf32>
    %3 = vector.extract_strided_slice %1 {offsets = [0, 1], sizes = [8, 1], strides = [1, 1]} : vector<8x2xf32> to vector<8x1xf32>
    %cst = arith.constant dense<0.000000e+00> : vector<8xf32>
    %4 = vector.multi_reduction <add>, %0, %cst [1] : vector<8x256xf32> to vector<8xf32>
    %5 = vector.shape_cast %4 : vector<8xf32> to vector<8x1xf32>
    %cst_3 = arith.constant 3.906250e-03 : f32
    %6 = vector.broadcast %cst_3 : f32 to vector<8x1xf32>
    %7 = arith.mulf %5, %6 : vector<8x1xf32>
    %8 = vector.broadcast %7 : vector<8x1xf32> to vector<8x256xf32>
    %9 = arith.subf %0, %8 : vector<8x256xf32>
    %10 = arith.mulf %9, %9 : vector<8x256xf32>
    %cst_4 = arith.constant dense<0.000000e+00> : vector<8xf32>
    %11 = vector.multi_reduction <add>, %10, %cst_4 [1] : vector<8x256xf32> to vector<8xf32>
    %12 = vector.shape_cast %11 : vector<8xf32> to vector<8x1xf32>
    %cst_5 = arith.constant 3.906250e-03 : f32
    %13 = vector.broadcast %cst_5 : f32 to vector<8x1xf32>
    %14 = arith.mulf %12, %13 : vector<8x1xf32>
    %cst_6 = arith.constant 9.99999974E-6 : f32
    %15 = vector.broadcast %cst_6 : f32 to vector<8x1xf32>
    %16 = arith.addf %14, %15 : vector<8x1xf32>
    %17 = math.rsqrt %16 : vector<8x1xf32>
    %18 = arith.mulf %2, %17 : vector<8x1xf32>
    %19 = vector.broadcast %18 : vector<8x1xf32> to vector<8x256xf32>
    %20 = arith.mulf %9, %19 : vector<8x256xf32>
    %21 = vector.broadcast %3 : vector<8x1xf32> to vector<8x256xf32>
    %22 = arith.addf %20, %21 : vector<8x256xf32>
    %c0_7 = arith.constant 0 : index
    %c0_8 = arith.constant 0 : index
    %23 = vector.load %arg3[%c0_7, %c0_8] : memref<8x256xf32, #tpu.memory_space<vmem>>, vector<8x256xf32>
    tpu.vector_store %arg3[%c0_7, %c0_8], %22 {strides = array<i32>} : memref<8x256xf32, #tpu.memory_space<vmem>>, vector<8x256xf32>,
    return
  }
  func.func @transform_0(%arg0: i32) -> (i32, i32) {
    %c0_i32 = arith.constant 0 : i32
    %c0_i32_0 = arith.constant 0 : i32
    return %arg0, %c0_i32 : i32, i32
  }
  func.func @transform_1(%arg0: i32) -> (i32, i32) {
    %c0_i32 = arith.constant 0 : i32
    %c0_i32_0 = arith.constant 0 : i32
    return %arg0, %c0_i32 : i32, i32
  }
  func.func @transform_2(%arg0: i32) -> (i32, i32) {
    %c0_i32 = arith.constant 0 : i32
    %c0_i32_0 = arith.constant 0 : i32
    return %arg0, %c0_i32 : i32, i32
  }
}

</mosaic_0001>

<llo_original>
// kernel: tpu_custom_call.1
$region0: #{tpu_custom_call.1}
  #allocation0 [shape = 'u32[]', space=smem, size = 0x4, offset = 0x4, fixed_abs, tag = 'smem constant byte address 0x4 - core index']
  #allocation1 [shape = 'u32[72,128]{1,0:T(1,128)}', space=vmem, size = 0x9000, scoped, tag = 'internal scratch']
  %s0 = inlined_call_operand.hbm [shape: f32[8,256], index: 0, kind: input, shape index: {}]
  %s1 = inlined_call_operand.vmem [shape: f32[8,2], index: 1, kind: input, shape index: {}]
  %s2 = inlined_call_operand.hbm [shape: f32[8,256], index: 2, kind: output, shape index: {}]
  %s3 = sld [smem:[#allocation0]]
  $region22: #{tpu_custom_call.1} parent=0
    _
  %s5 = ssub.s32 1, %s3
  %s6 = scalar_select 0, %s5, %s3
  $region1: #{tpu_custom_call.1} parent=0
    #allocation2 [shape = 'u8[8192]{0}', space=vmem, size = 0x2000, scoped, tag = 'input window, operand 0, single buffered']
    #allocation3 [shape = 's32[1]{0}', space=sflag, size = 0x4, scoped, tag = 'scoped memory for tpu_custom_call.1']
    #allocation4 [shape = 's32[1]{0}', space=sflag, size = 0x4, scoped, tag = 'scoped memory for tpu_custom_call.1']
    #allocation5 [shape = 'u8[8192]{0}', space=vmem, size = 0x2000, scoped, tag = 'output window, operand 0, single buffered']
    %7 = vsyncpa [#allocation3], 0
    %8 = vsyncpa [#allocation4], 0
    // Predicated region
    $region2: #{tpu_custom_call.1} parent=1 // pred_check
      _
    $region3: #{tpu_custom_call.1} parent=1 // pred_check_branch
      %10 = sbr.rel (0) target = $region5
    $region4: #{tpu_custom_call.1} parent=1 // pred_region
      %12 = vsyncadd [#allocation3], 0
      %s14 = sshll.u32 %s0, 4
      %s15 = int_to_ptr.hbm [resolvable:$true] %s14
      %s16 = sshll.u32 [#allocation2], 4
      %s17 = int_to_ptr.vmem [resolvable:$true] %s16
      %19 = dma.hbm_to_vmem [thread:$0]  %s15, 256, %s17, [#allocation3]
    $region5: #{tpu_custom_call.1} parent=1 // pred_fallthru
      _
    // Predicated region
    $region6: #{tpu_custom_call.1} parent=1 // pred_check
      _
    $region7: #{tpu_custom_call.1} parent=1 // pred_check_branch
      %21 = sbr.rel (0) target = $region9
    $region8: #{tpu_custom_call.1} parent=1 // pred_region
      _
    $region9: #{tpu_custom_call.1} parent=1 // pred_fallthru
      _
    // Predicated region
    $region10: #{tpu_custom_call.1} parent=1 // pred_check
      _
    $region11: #{tpu_custom_call.1} parent=1 // pred_check_branch
      %23 = sbr.rel (0) target = $region13
    $region12: #{tpu_custom_call.1} parent=1 // pred_region
      %25 = dma.done [#allocation3], 256
    $region13: #{tpu_custom_call.1} parent=1 // pred_fallthru
      _
    %v26 = vld [vmem:[#allocation2] sm:$0xff]
    %v27 = vld [vmem:[#allocation2 + $0x8] sm:$0xff]
    %v28 = vld [vmem:[%s1] sm:$0xff]
    %v29 = vadd.f32 %v26, %v27
    %30 = vadd.xlane.f32.xlu0 %v29
    %v31 = vpop.xlane.xlu0 %30
    %v32 = vmul.f32 %v31, 0.00390625
    %v33 = vsub.f32 %v26, %v32
    %v34 = vsub.f32 %v27, %v32
    %v35 = vmul.f32 %v33, %v33
    %v36 = vmul.f32 %v34, %v34
    %v37 = vadd.f32 %v35, %v36
    %38 = vadd.xlane.f32.xlu0 %v37
    %v39 = vpop.xlane.xlu0 %38
    %v40 = vmul.f32 %v39, 0.00390625
    %v41 = vadd.f32 %v40, 1e-05
    %v42 = vrsqrt.pop %v41
    %v43 = vmul.f32 %v42, %v41
    %v44 = vmul.f32 %v43, %v42
    %v45 = vmul.f32 0.5, %v44
    %v46 = vsub.f32 1.5, %v45
    %v47 = vmul.f32 %v42, %v46
    %vm48 = vweird.f32 %v41
    %vm49 = vweird.f32 %v42
    %vm50 = vmor %vm48, %vm49
    %v51 = vsel %vm50, %v42, %v47
    %v52 = vmul.f32 %v28, %v51
    %54 = vset.pattern.permute.xlu0 0
    %55 = vperm.xlu0 %54, %v52
    %v56 = vpop.permute.xlu0 %55
    %v58 = vmul.f32 %v33, %v56
    %v59 = vmul.f32 %v34, %v56
    %61 = vset.pattern.permute.xlu0 1
    %62 = vperm.xlu0 %61, %v28
    %v63 = vpop.permute.xlu0 %62
    %v65 = vadd.f32 %v58, %v63
    %v66 = vadd.f32 %v59, %v63
    %67 = vst [vmem:[#allocation5] sm:$0xff] %v65
    %68 = vst [vmem:[#allocation5 + $0x8] sm:$0xff] %v66
    // Predicated region
    $region14: #{tpu_custom_call.1} parent=1 // pred_check
      _
    $region15: #{tpu_custom_call.1} parent=1 // pred_check_branch
      %70 = sbr.rel (0) target = $region17
    $region16: #{tpu_custom_call.1} parent=1 // pred_region
      %72 = vsyncadd [#allocation4], 0
      %s74 = sshll.u32 [#allocation5], 4
      %s75 = int_to_ptr.vmem [resolvable:$true] %s74
      %s76 = sshll.u32 %s2, 4
      %s77 = int_to_ptr.hbm [resolvable:$true] %s76
      %79 = dma.vmem_to_hbm [thread:$0]  %s75, 256, %s77, [#allocation4]
    $region17: #{tpu_custom_call.1} parent=1 // pred_fallthru
      _
    // Predicated region
    $region18: #{tpu_custom_call.1} parent=1 // pred_check
      _
    $region19: #{tpu_custom_call.1} parent=1 // pred_check_branch
      %81 = sbr.rel (0) target = $region21
    $region20: #{tpu_custom_call.1} parent=1 // pred_region
      %83 = dma.done [#allocation4], 256
    $region21: #{tpu_custom_call.1} parent=1 // pred_fallthru
      _
    %84 = vsyncpa [#allocation3], 1
    %85 = vsyncpa [#allocation4], 1

</llo_original>
